<compile_context>
chip_gen: v7x
topology: tpu7x:2x2x1
jax: 0.10.0
libtpu: 0.0.40
codegen_flags: <defaults>
</compile_context>

<pallas_src>
import math

import jax
import jax.numpy as jnp
from jax.experimental import pallas as pl
from jax.experimental.pallas import tpu as pltpu


LANES = 128          # TPU lane width; last dim of every block
BLOCK_ROWS = 1024    # 1024 rows x 128 lanes x 4 B = 512 KiB / operand block:
                     # 3 operands x 2 pipeline buffers = 3 MiB, fits every gen.


# ----------------------------------------------------------------------------
# Sinusoidal table — identical to the PyTorch `register_buffer('pe', ...)`.
# ----------------------------------------------------------------------------
def make_pe_table(max_len, d_model, dtype=jnp.float32):
    position = jnp.arange(max_len, dtype=jnp.float32)[:, None]            # (L, 1)
    div_term = jnp.exp(
        jnp.arange(0, d_model, 2, dtype=jnp.float32)
        * (-math.log(10000.0) / d_model))                                 # (D/2,)
    ang = position * div_term                                             # (L, D/2)
    # interleave: pe[:, 0::2] = sin, pe[:, 1::2] = cos
    pe = jnp.stack([jnp.sin(ang), jnp.cos(ang)], axis=-1).reshape(max_len, d_model)
    return pe.astype(dtype)


# ----------------------------------------------------------------------------
# One-time pe slab bake: sliced to S, cast to the activation dtype, broadcast
# over batch, and flattened to the same ((B*S*D)//128, 128) layout as x.
# Done once at setup, NOT per forward call.
# ----------------------------------------------------------------------------
def make_pe_slab(pe_table, batch, seq_len, d_model, dtype):
    max_len = pe_table.shape[0]
    assert seq_len <= max_len, (
        f"sequence length {seq_len} exceeds max_len {max_len}")
    total = batch * seq_len * d_model
    assert total % LANES == 0, "B*S*D must be a multiple of 128 for this layout"
    pe = pe_table[:seq_len].astype(dtype)                                 # (S, D)
    pe = jnp.broadcast_to(pe[None], (batch, seq_len, d_model))            # (B, S, D)
    return pe.reshape(total // LANES, LANES)


# ----------------------------------------------------------------------------
# Kernel: full-width elementwise add on identically-shaped slabs.
# ----------------------------------------------------------------------------
def pe_add_kernel(x_ref, pe_ref, o_ref):
    o_ref[...] = x_ref[...] + pe_ref[...]


# ----------------------------------------------------------------------------
# Wrapper: single pallas_call; gridless at toy shapes, row-tiled + parallel
# (2 TCs on v7x) once the slab exceeds one block.
# ----------------------------------------------------------------------------
def positional_encoding_forward(x, pe_slab):
    """x: (B, S, D); pe_slab: ((B*S*D)//128, 128) pre-baked pe in x.dtype."""
    B, S, D = x.shape
    total = B * S * D
    assert total % LANES == 0, "B*S*D must be a multiple of 128 for this layout"
    rows = total // LANES
    assert pe_slab.shape == (rows, LANES) and pe_slab.dtype == x.dtype

    x2 = x.reshape(rows, LANES)                       # sublane+lane dense view

    if rows <= BLOCK_ROWS:
        tm = rows                                      # whole slab, grid of 1
    else:
        tm = BLOCK_ROWS                                # multiple of 8
    grid = (pl.cdiv(rows, tm),)

    out2 = pl.pallas_call(
        pe_add_kernel,
        out_shape=jax.ShapeDtypeStruct((rows, LANES), x.dtype),
        grid=grid,
        in_specs=[
            pl.BlockSpec((tm, LANES), lambda i: (i, 0)),
            pl.BlockSpec((tm, LANES), lambda i: (i, 0)),
        ],
        out_specs=pl.BlockSpec((tm, LANES), lambda i: (i, 0)),
        input_output_aliases={0: 0},                   # reuse x's buffer
        compiler_params=pltpu.CompilerParams(
            dimension_semantics=("parallel",)),
    )(x2, pe_slab)

    # TODO(synk): nn.Dropout(p=0.1) is identity in eval mode (what this forward
    # implements); a training-mode variant would draw a keep-mask in-kernel with
    # pltpu.prng_seed + pltpu.stateful_bernoulli and rescale by 1/(1-p).
    return out2.reshape(B, S, D)


if __name__ == "__main__":
    # Module args: d_model=32, dropout=0.1 (eval => identity), max_len=5000.
    B, S, D_MODEL = 2, 8, 32
    MAX_LEN = 5000

    key = jax.random.PRNGKey(0)
    x = jax.random.normal(key, (B, S, D_MODEL), jnp.float32)

    pe_table = make_pe_table(MAX_LEN, D_MODEL)                 # the module buffer
    pe_slab = make_pe_slab(pe_table, B, S, D_MODEL, x.dtype)   # baked once

    fwd = jax.jit(positional_encoding_forward)
    out = jax.block_until_ready(fwd(x, pe_slab))

    # Reference check against the plain-JAX formula (PyTorch semantics).
    ref = x + pe_table[:S][None, :, :]
    assert out.shape == (B, S, D_MODEL)
    assert bool(jnp.all(jnp.isfinite(out)))
    assert bool(jnp.allclose(out, ref, atol=1e-6, rtol=1e-6))
    print("KERNEL_OK")
</pallas_src>

<mosaic_0001>
module attributes {stable_mosaic.version = 11 : i64} {
  func.func @pe_add_kernel(%arg0: i32, %arg1: memref<4x128xf32, #tpu.memory_space<vmem>>, %arg2: memref<4x128xf32, #tpu.memory_space<vmem>>, %arg3: memref<4x128xf32, #tpu.memory_space<vmem>>) attributes {dimension_semantics = [#tpu.dimension_semantics<parallel>], iteration_bounds = array<i64: 1>, scalar_prefetch = 0 : i64, scratch_operands = 0 : i64, tpu.core_type = #tpu.core_type<tc>, window_params = [{transform_indices = @transform_0, window_bounds = array<i64: 4, 128>}, {transform_indices = @transform_1, window_bounds = array<i64: 4, 128>}, {transform_indices = @transform_2, window_bounds = array<i64: 4, 128>}]} {
    %c0 = arith.constant 0 : index
    %c0_0 = arith.constant 0 : index
    %0 = vector.load %arg1[%c0, %c0_0] : memref<4x128xf32, #tpu.memory_space<vmem>>, vector<4x128xf32>
    %c0_1 = arith.constant 0 : index
    %c0_2 = arith.constant 0 : index
    %1 = vector.load %arg2[%c0_1, %c0_2] : memref<4x128xf32, #tpu.memory_space<vmem>>, vector<4x128xf32>
    %2 = arith.addf %0, %1 : vector<4x128xf32>
    %c0_3 = arith.constant 0 : index
    %c0_4 = arith.constant 0 : index
    %3 = vector.load %arg3[%c0_3, %c0_4] : memref<4x128xf32, #tpu.memory_space<vmem>>, vector<4x128xf32>
    tpu.vector_store %arg3[%c0_3, %c0_4], %2 {strides = array<i32>} : memref<4x128xf32, #tpu.memory_space<vmem>>, vector<4x128xf32>,
    return
  }
  func.func @transform_0(%arg0: i32) -> (i32, i32) {
    %c0_i32 = arith.constant 0 : i32
    %c0_i32_0 = arith.constant 0 : i32
    return %arg0, %c0_i32 : i32, i32
  }
  func.func @transform_1(%arg0: i32) -> (i32, i32) {
    %c0_i32 = arith.constant 0 : i32
    %c0_i32_0 = arith.constant 0 : i32
    return %arg0, %c0_i32 : i32, i32
  }
  func.func @transform_2(%arg0: i32) -> (i32, i32) {
    %c0_i32 = arith.constant 0 : i32
    %c0_i32_0 = arith.constant 0 : i32
    return %arg0, %c0_i32 : i32, i32
  }
}

</mosaic_0001>

<llo_original>
// kernel: positional_encoding_forward.1
$region0: #{positional_encoding_forward.1}
  #allocation0 [shape = 'u32[]', space=smem, size = 0x4, offset = 0x4, fixed_abs, tag = 'smem constant byte address 0x4 - core index']
  #allocation1 [shape = 'u32[144,128]{1,0:T(1,128)}', space=vmem, size = 0x12000, scoped, tag = 'internal scratch']
  %s0 = inlined_call_operand.vmem [shape: f32[4,128], index: 0, kind: input, shape index: {}, may-alias: {0,2}]
  %s1 = inlined_call_operand.vmem [shape: f32[4,128], index: 1, kind: input, shape index: {}]
  %s2 = inlined_call_operand.vmem [shape: f32[4,128], index: 2, kind: output, shape index: {}, may-alias: {0,2}]
  %s3 = sld [smem:[#allocation0]]
  $region18: #{positional_encoding_forward.1} parent=0
    _
  %s5 = ssub.s32 1, %s3
  %s6 = scalar_select 0, %s5, %s3
  // Predicated region
  $region2: #{positional_encoding_forward.1} parent=0 // pred_check
    _
  $region3: #{positional_encoding_forward.1} parent=0 // pred_check_branch
    %8 = sbr.rel (0) target = $region5
  $region4: #{positional_encoding_forward.1} parent=0 // pred_region
    _
  $region5: #{positional_encoding_forward.1} parent=0 // pred_fallthru
    _
  // Predicated region
  $region6: #{positional_encoding_forward.1} parent=0 // pred_check
    _
  $region7: #{positional_encoding_forward.1} parent=0 // pred_check_branch
    %10 = sbr.rel (0) target = $region9
  $region8: #{positional_encoding_forward.1} parent=0 // pred_region
    _
  $region9: #{positional_encoding_forward.1} parent=0 // pred_fallthru
    _
  %v11 = vld [vmem:[%s0] sm:$0xf]
  %v12 = vld [vmem:[%s1] sm:$0xf]
  %v13 = vadd.f32 %v11, %v12
  %14 = vst [vmem:[%s2] sm:$0xf] %v13
  // Predicated region
  $region10: #{positional_encoding_forward.1} parent=0 // pred_check
    _
  $region11: #{positional_encoding_forward.1} parent=0 // pred_check_branch
    %16 = sbr.rel (0) target = $region13
  $region12: #{positional_encoding_forward.1} parent=0 // pred_region
    _
  $region13: #{positional_encoding_forward.1} parent=0 // pred_fallthru
    _
  // Predicated region
  $region14: #{positional_encoding_forward.1} parent=0 // pred_check
    _
  $region15: #{positional_encoding_forward.1} parent=0 // pred_check_branch
    %18 = sbr.rel (0) target = $region17
  $region16: #{positional_encoding_forward.1} parent=0 // pred_region
    _
  $region17: #{positional_encoding_forward.1} parent=0 // pred_fallthru
    _

</llo_original>
